<compile_context>
chip_gen: v5e
topology: v5e:2x2
jax: 0.10.0
libtpu: 0.0.40
codegen_flags: <defaults>
</compile_context>

<pallas_src>
import functools

import jax
import jax.numpy as jnp
from jax import lax
from jax.experimental import pallas as pl
from jax.experimental.pallas import tpu as pltpu


EPS = 1e-5                      # nn.LayerNorm default eps
_LANE = 128
_SUBLANE = 8
_SQRT_2_OVER_PI = 0.7978845608028654
_MIB = 1024 * 1024


def _round_up(x, m):
    return ((x + m - 1) // m) * m


def _pad_axis(x, axis, target):
    pad = target - x.shape[axis]
    if pad == 0:
        return x
    widths = [(0, 0)] * x.ndim
    widths[axis] = (0, pad)
    return jnp.pad(x, widths)


def _vit_block_kernel(z_ref, w1_ref, b1_ref, w2_ref, b2_ref, o_ref,
                      xn_ref, acc_ref, *,
                      d_real, th, n_chunks, masked_lanes, gelu_dtype):
    """One (tm, Dp) token tile: ln2 -> MLP (chunked over H) -> 2*mlp + z."""
    # ---- LayerNorm (ln2): two-pass centered variance in f32 ----
    z = z_ref[...].astype(jnp.float32)                       # (tm, Dp)
    inv_d = 1.0 / d_real
    mean = jnp.sum(z, axis=-1, keepdims=True) * inv_d
    centered = z - mean
    if masked_lanes:
        # Padded lanes of z are zeros; zero them after centering so they do
        # not contaminate the variance / xn.
        lane = lax.broadcasted_iota(jnp.int32, (1, z.shape[-1]), 1)
        centered = jnp.where(lane < d_real, centered, 0.0)
    var = jnp.sum(centered * centered, axis=-1, keepdims=True) * inv_d
    xn = centered * lax.rsqrt(var + EPS)
    # gamma/beta are folded into w1/b1 by the wrapper.
    xn_ref[...] = xn.astype(xn_ref.dtype)                    # bf16 MXU staging
    acc_ref[...] = jnp.zeros_like(acc_ref)

    # ---- MLP: Linear(D->H) -> GELU(tanh) -> Linear(H->D), chunked over H ----
    def chunk(j, carry):
        hs = pl.multiple_of(j * th, th)
        h = jnp.dot(xn_ref[...], w1_ref[:, pl.ds(hs, th)],
                    preferred_element_type=jnp.float32)       # (tm, th) f32
        h = h + b1_ref[:, pl.ds(hs, th)]
        hg = h.astype(gelu_dtype)                             # bf16 VALU/EUP
        g = 0.5 * hg * (1.0 + jnp.tanh(
            _SQRT_2_OVER_PI * (hg + 0.044715 * hg * hg * hg)))
        acc_ref[...] += jnp.dot(g.astype(w2_ref.dtype),
                                w2_ref[pl.ds(hs, th), :],
                                preferred_element_type=jnp.float32)
        return carry

    lax.fori_loop(0, n_chunks, chunk, 0, unroll=True)

    # w2/b2 were pre-scaled by 2 in the wrapper:  out = 2*mlp(ln2(z)) + z.
    o_ref[...] = (acc_ref[...] + b2_ref[...]
                  + z_ref[...].astype(jnp.float32)).astype(o_ref.dtype)


def fold_vit_block_weights(gamma, beta, w1, b1, w2, b2, *,
                           compute_dtype=jnp.bfloat16):
    """One-time weight preparation (call once per weight set and reuse).

    Folds the ln2 affine into W1/b1 and the 2x of the double residual into
    W2/b2, pads lane dims to multiples of 128 (only if needed), and casts the
    weight matrices to the MXU compute dtype.
    """
    D, H = w1.shape
    assert w2.shape == (H, D)
    w1f = gamma.astype(jnp.float32)[:, None] * w1.astype(jnp.float32)
    b1f = b1.astype(jnp.float32) + beta.astype(jnp.float32) @ w1.astype(jnp.float32)
    w2f = 2.0 * w2.astype(jnp.float32)
    b2f = 2.0 * b2.astype(jnp.float32)

    Dp = _round_up(max(D, _LANE), _LANE)
    Hp = _round_up(max(H, _LANE), _LANE)
    w1p = _pad_axis(_pad_axis(w1f, 0, Dp), 1, Hp).astype(compute_dtype)   # (Dp, Hp)
    b1p = _pad_axis(b1f.reshape(1, H), 1, Hp)                             # (1, Hp) f32
    w2p = _pad_axis(_pad_axis(w2f, 0, Hp), 1, Dp).astype(compute_dtype)   # (Hp, Dp)
    b2p = _pad_axis(b2f.reshape(1, D), 1, Dp)                             # (1, Dp) f32
    return dict(w1=w1p, b1=b1p, w2=w2p, b2=b2p, D=D, H=H, Dp=Dp, Hp=Hp)


def vit_decoder_block(z, folded, *,
                      tm=512,
                      compute_dtype=jnp.bfloat16,
                      gelu_dtype=jnp.bfloat16,     # use jnp.float32 on v5e
                      hidden_chunk=512,
                      vmem_limit_bytes=None):
    """z: (B, N, D).  `folded` comes from fold_vit_block_weights()."""
    B, N, D = z.shape
    assert D == folded["D"]
    H, Dp, Hp = folded["H"], folded["Dp"], folded["Hp"]
    M = B * N
    out_dtype = z.dtype

    # Keep z in its native dtype; only pad lanes if D is not 128-aligned.
    z2 = z.reshape(M, D)
    if Dp != D:
        z2 = _pad_axis(z2, 1, Dp)

    # ---- token tile ----
    assert tm % _SUBLANE == 0
    tm_eff = M if M <= tm else tm
    grid = (pl.cdiv(M, tm_eff),)
    # TODO(synk): on v7x pick tm so the token grid has >= 2 even blocks so the
    # "parallel" axis shards across both TensorCores.

    # ---- hidden chunk: biggest multiple of 128 dividing Hp, <= hidden_chunk ----
    th = min(_round_up(hidden_chunk, _LANE), Hp)
    while Hp % th != 0:
        th -= _LANE
    n_chunks = Hp // th

    # ---- explicit VMEM budget (weights single-buffered + streamed tiles) ----
    cd_bytes = jnp.dtype(compute_dtype).itemsize
    z_bytes = jnp.dtype(z.dtype).itemsize
    o_bytes = jnp.dtype(out_dtype).itemsize
    weights_vmem = (Dp * Hp + Hp * Dp) * cd_bytes + (Hp + Dp) * 4
    stream_vmem = 2 * tm_eff * Dp * (z_bytes + o_bytes)     # double-buffered z/out
    scratch_vmem = tm_eff * Dp * (cd_bytes + 4)             # xn (bf16) + f32 acc
    chunk_vmem = 3 * tm_eff * th * 4                        # live chunk intermediates
    budget = weights_vmem + stream_vmem + scratch_vmem + chunk_vmem + 4 * _MIB
    if vmem_limit_bytes is None:
        try:
            cap = int(pltpu.get_tpu_info().vmem_capacity_bytes)
        except Exception:
            cap = 64 * _MIB                                  # conservative (v7x-sized)
        vmem_limit_bytes = min(max(budget, 32 * _MIB), int(cap * 0.75))

    cost = pl.CostEstimate(
        flops=4 * M * D * H,                                 # two matmuls
        transcendentals=M * H,                               # tanh in GELU
        bytes_accessed=M * Dp * (z_bytes + o_bytes)
                       + (Dp * Hp + Hp * Dp) * cd_bytes + (Hp + Dp) * 4,
    )

    kernel = functools.partial(
        _vit_block_kernel, d_real=D, th=th, n_chunks=n_chunks,
        masked_lanes=(Dp != D), gelu_dtype=gelu_dtype)

    def _resident(shape):
        # Constant index_map => single-buffer (second pipeline buffer unused).
        return pl.BlockSpec(shape, lambda i: (0, 0), pipeline_mode=pl.Buffered(1))

    out = pl.pallas_call(
        kernel,
        out_shape=jax.ShapeDtypeStruct((M, Dp), out_dtype),
        grid_spec=pltpu.PrefetchScalarGridSpec(
            num_scalar_prefetch=0,
            grid=grid,
            in_specs=[
                pl.BlockSpec((tm_eff, Dp), lambda i: (i, 0)),   # z tile (streamed)
                _resident((Dp, Hp)),                            # w1 (bf16, resident)
                _resident((1, Hp)),                             # b1 (f32)
                _resident((Hp, Dp)),                            # w2 (bf16, resident)
                _resident((1, Dp)),                             # b2 (f32)
            ],
            out_specs=pl.BlockSpec((tm_eff, Dp), lambda i: (i, 0)),
            scratch_shapes=[
                pltpu.VMEM((tm_eff, Dp), compute_dtype),        # xn staging
                pltpu.VMEM((tm_eff, Dp), jnp.float32),          # MLP accumulator
            ],
        ),
        compiler_params=pltpu.CompilerParams(
            dimension_semantics=("parallel",),
            vmem_limit_bytes=int(vmem_limit_bytes),
        ),
        cost_estimate=cost,
    )(z2, folded["w1"], folded["b1"], folded["w2"], folded["b2"])

    if Dp != D:
        out = out[:, :D]
    return out.reshape(B, N, D)


def _reference(z, gamma, beta, w1, b1, w2, b2):
    # pure-JAX f32 reference of the PyTorch forward (exact erf GELU).
    zf = z.astype(jnp.float32)
    mean = jnp.mean(zf, axis=-1, keepdims=True)
    var = jnp.mean((zf - mean) ** 2, axis=-1, keepdims=True)
    xn = (zf - mean) / jnp.sqrt(var + EPS) * gamma + beta
    h = xn @ w1 + b1
    g = 0.5 * h * (1.0 + lax.erf(h / jnp.sqrt(2.0)))
    m = g @ w2 + b2
    out = m + zf
    out = m + out
    return out.astype(z.dtype)


if __name__ == "__main__":
    # Small shapes consistent with the module's forward.
    B, N, D = 2, 8, 32
    H = 4 * D  # hidden_dim = emb_dim * 4

    key = jax.random.PRNGKey(0)
    kz, k1, k2, k3, k4 = jax.random.split(key, 5)

    z = jax.random.normal(kz, (B, N, D), dtype=jnp.float32)

    gamma = jnp.ones((D,), jnp.float32)
    beta = jnp.zeros((D,), jnp.float32)
    # stored already transposed for row-major matmul: x @ W1, h @ W2
    w1 = jax.random.normal(k1, (D, H), dtype=jnp.float32) * 0.02
    b1 = jax.random.normal(k2, (H,), dtype=jnp.float32) * 0.02
    w2 = jax.random.normal(k3, (H, D), dtype=jnp.float32) * 0.02
    b2 = jax.random.normal(k4, (D,), dtype=jnp.float32) * 0.02

    # Weight folding/padding runs once per weight set (inference constants).
    folded = fold_vit_block_weights(gamma, beta, w1, b1, w2, b2)

    out = vit_decoder_block(z, folded)
    out = jax.block_until_ready(out)

    ref = _reference(z, gamma, beta, w1, b1, w2, b2)
    assert out.shape == (B, N, D)
    # bf16 matmuls/GELU + tanh-approx GELU vs f32/erf reference: loose tol.
    assert jnp.allclose(out, ref, atol=1e-2, rtol=1e-2), (
        float(jnp.max(jnp.abs(out - ref))))

    print("KERNEL_OK")
</pallas_src>

<mosaic_0001>
module attributes {stable_mosaic.version = 11 : i64} {
  func.func @_vit_block_kernel(%arg0: i32, %arg1: memref<16x128xf32, #tpu.memory_space<vmem>>, %arg2: memref<128x128xbf16, #tpu.memory_space<vmem>>, %arg3: memref<1x128xf32, #tpu.memory_space<vmem>>, %arg4: memref<128x128xbf16, #tpu.memory_space<vmem>>, %arg5: memref<1x128xf32, #tpu.memory_space<vmem>>, %arg6: memref<16x128xf32, #tpu.memory_space<vmem>>, %arg7: memref<16x128xbf16, #tpu.memory_space<vmem>>, %arg8: memref<16x128xf32, #tpu.memory_space<vmem>>) attributes {dimension_semantics = [#tpu.dimension_semantics<parallel>], iteration_bounds = array<i64: 1>, scalar_prefetch = 0 : i64, scratch_operands = 2 : i64, tpu.core_type = #tpu.core_type<tc>, window_params = [{transform_indices = @transform_0, window_bounds = array<i64: 16, 128>}, {pipeline_mode = #tpu.pipeline_mode<synchronous>, transform_indices = @transform_1, window_bounds = array<i64: 128, 128>}, {pipeline_mode = #tpu.pipeline_mode<synchronous>, transform_indices = @transform_2, window_bounds = array<i64: 1, 128>}, {pipeline_mode = #tpu.pipeline_mode<synchronous>, transform_indices = @transform_3, window_bounds = array<i64: 128, 128>}, {pipeline_mode = #tpu.pipeline_mode<synchronous>, transform_indices = @transform_4, window_bounds = array<i64: 1, 128>}, {transform_indices = @transform_5, window_bounds = array<i64: 16, 128>}]} {
    %c0 = arith.constant 0 : index
    %c0_0 = arith.constant 0 : index
    %0 = vector.load %arg1[%c0, %c0_0] : memref<16x128xf32, #tpu.memory_space<vmem>>, vector<16x128xf32>
    %cst = arith.constant dense<0.000000e+00> : vector<16xf32>
    %1 = vector.multi_reduction <add>, %0, %cst [1] : vector<16x128xf32> to vector<16xf32>
    %2 = vector.shape_cast %1 : vector<16xf32> to vector<16x1xf32>
    %cst_1 = arith.constant 3.125000e-02 : f32
    %3 = vector.broadcast %cst_1 : f32 to vector<16x1xf32>
    %4 = arith.mulf %2, %3 : vector<16x1xf32>
    %5 = vector.broadcast %4 : vector<16x1xf32> to vector<16x128xf32>
    %6 = arith.subf %0, %5 : vector<16x128xf32>
    %7 = tpu.iota {dimensions = array<i32: 1>} : vector<1x128xi32>
    %c32_i32 = arith.constant 32 : i32
    %8 = vector.broadcast %c32_i32 : i32 to vector<1x128xi32>
    %9 = arith.cmpi slt, %7, %8 : vector<1x128xi32>
    %cst_2 = arith.constant 0.000000e+00 : f32
    %10 = vector.shape_cast %9 : vector<1x128xi1> to vector<1x128xi1>
    %11 = vector.broadcast %10 : vector<1x128xi1> to vector<16x128xi1>
    %12 = vector.broadcast %cst_2 : f32 to vector<16x128xf32>
    %13 = arith.select %11, %6, %12 : vector<16x128xi1>, vector<16x128xf32>
    %14 = arith.mulf %13, %13 : vector<16x128xf32>
    %cst_3 = arith.constant dense<0.000000e+00> : vector<16xf32>
    %15 = vector.multi_reduction <add>, %14, %cst_3 [1] : vector<16x128xf32> to vector<16xf32>
    %16 = vector.shape_cast %15 : vector<16xf32> to vector<16x1xf32>
    %cst_4 = arith.constant 3.125000e-02 : f32
    %17 = vector.broadcast %cst_4 : f32 to vector<16x1xf32>
    %18 = arith.mulf %16, %17 : vector<16x1xf32>
    %cst_5 = arith.constant 9.99999974E-6 : f32
    %19 = vector.broadcast %cst_5 : f32 to vector<16x1xf32>
    %20 = arith.addf %18, %19 : vector<16x1xf32>
    %21 = math.rsqrt %20 : vector<16x1xf32>
    %22 = vector.broadcast %21 : vector<16x1xf32> to vector<16x128xf32>
    %23 = arith.mulf %13, %22 : vector<16x128xf32>
    %24 = arith.truncf %23 : vector<16x128xf32> to vector<16x128xbf16>
    %c0_6 = arith.constant 0 : index
    %c0_7 = arith.constant 0 : index
    %25 = vector.load %arg7[%c0_6, %c0_7] : memref<16x128xbf16, #tpu.memory_space<vmem>>, vector<16x128xbf16>
    tpu.vector_store %arg7[%c0_6, %c0_7], %24 {strides = array<i32>} : memref<16x128xbf16, #tpu.memory_space<vmem>>, vector<16x128xbf16>,
    %cst_8 = arith.constant 0.000000e+00 : f32
    %26 = vector.broadcast %cst_8 : f32 to vector<16x128xf32>
    %c0_9 = arith.constant 0 : index
    %c0_10 = arith.constant 0 : index
    %27 = vector.load %arg8[%c0_9, %c0_10] : memref<16x128xf32, #tpu.memory_space<vmem>>, vector<16x128xf32>
    tpu.vector_store %arg8[%c0_9, %c0_10], %26 {strides = array<i32>} : memref<16x128xf32, #tpu.memory_space<vmem>>, vector<16x128xf32>,
    %c0_i32 = arith.constant 0 : i32
    %c128_i32 = arith.constant 128 : i32
    %28 = arith.muli %c0_i32, %c128_i32 : i32
    %29 = tpu.assume_multiple %28, 128 : i32
    %c0_11 = arith.constant 0 : index
    %c0_12 = arith.constant 0 : index
    %30 = vector.load %arg7[%c0_11, %c0_12] : memref<16x128xbf16, #tpu.memory_space<vmem>>, vector<16x128xbf16>
    %c0_13 = arith.constant 0 : index
    %31 = arith.index_cast %29 : i32 to index
    %32 = vector.load %arg2[%c0_13, %31] : memref<128x128xbf16, #tpu.memory_space<vmem>>, vector<128x128xbf16>
    %cst_14 = arith.constant dense<0.000000e+00> : vector<16x128xf32>
    %33 = tpu.matmul %30, %32, %cst_14 {dimension_numbers = #tpu.dot_dimension_numbers<[1], [0], [0], [1], [0, 0, 1, 1], [], []>} : vector<16x128xbf16>, vector<128x128xbf16>, vector<16x128xf32> -> vector<16x128xf32>
    %c0_15 = arith.constant 0 : index
    %34 = arith.index_cast %29 : i32 to index
    %35 = vector.load %arg3[%c0_15, %34] : memref<1x128xf32, #tpu.memory_space<vmem>>, vector<1x128xf32>
    %36 = vector.broadcast %35 : vector<1x128xf32> to vector<16x128xf32>
    %37 = arith.addf %33, %36 : vector<16x128xf32>
    %38 = arith.truncf %37 : vector<16x128xf32> to vector<16x128xbf16>
    %cst_16 = arith.constant 5.000000e-01 : bf16
    %39 = vector.broadcast %cst_16 : bf16 to vector<16x128xbf16>
    %40 = arith.mulf %39, %38 : vector<16x128xbf16>
    %cst_17 = arith.constant 4.467770e-02 : bf16
    %41 = vector.broadcast %cst_17 : bf16 to vector<16x128xbf16>
    %42 = arith.mulf %41, %38 : vector<16x128xbf16>
    %43 = arith.mulf %42, %38 : vector<16x128xbf16>
    %44 = arith.mulf %43, %38 : vector<16x128xbf16>
    %45 = arith.addf %38, %44 : vector<16x128xbf16>
    %cst_18 = arith.constant 7.968750e-01 : bf16
    %46 = vector.broadcast %cst_18 : bf16 to vector<16x128xbf16>
    %47 = arith.mulf %46, %45 : vector<16x128xbf16>
    %48 = math.tanh %47 : vector<16x128xbf16>
    %cst_19 = arith.constant 1.000000e+00 : bf16
    %49 = vector.broadcast %cst_19 : bf16 to vector<16x128xbf16>
    %50 = arith.addf %49, %48 : vector<16x128xbf16>
    %51 = arith.mulf %40, %50 : vector<16x128xbf16>
    %c0_20 = arith.constant 0 : index
    %c0_21 = arith.constant 0 : index
    %52 = vector.load %arg8[%c0_20, %c0_21] : memref<16x128xf32, #tpu.memory_space<vmem>>, vector<16x128xf32>
    %53 = arith.index_cast %29 : i32 to index
    %c0_22 = arith.constant 0 : index
    %54 = vector.load %arg4[%53, %c0_22] : memref<128x128xbf16, #tpu.memory_space<vmem>>, vector<128x128xbf16>
    %cst_23 = arith.constant dense<0.000000e+00> : vector<16x128xf32>
    %55 = tpu.matmul %51, %54, %cst_23 {dimension_numbers = #tpu.dot_dimension_numbers<[1], [0], [0], [1], [0, 0, 1, 1], [], []>} : vector<16x128xbf16>, vector<128x128xbf16>, vector<16x128xf32> -> vector<16x128xf32>
    %56 = arith.addf %52, %55 : vector<16x128xf32>
    %c0_24 = arith.constant 0 : index
    %c0_25 = arith.constant 0 : index
    %57 = vector.load %arg8[%c0_24, %c0_25] : memref<16x128xf32, #tpu.memory_space<vmem>>, vector<16x128xf32>
    tpu.vector_store %arg8[%c0_24, %c0_25], %56 {strides = array<i32>} : memref<16x128xf32, #tpu.memory_space<vmem>>, vector<16x128xf32>,
    %c1_i32 = arith.constant 1 : i32
    %c0_26 = arith.constant 0 : index
    %c0_27 = arith.constant 0 : index
    %58 = vector.load %arg8[%c0_26, %c0_27] : memref<16x128xf32, #tpu.memory_space<vmem>>, vector<16x128xf32>
    %c0_28 = arith.constant 0 : index
    %c0_29 = arith.constant 0 : index
    %59 = vector.load %arg5[%c0_28, %c0_29] : memref<1x128xf32, #tpu.memory_space<vmem>>, vector<1x128xf32>
    %60 = vector.broadcast %59 : vector<1x128xf32> to vector<16x128xf32>
    %61 = arith.addf %58, %60 : vector<16x128xf32>
    %c0_30 = arith.constant 0 : index
    %c0_31 = arith.constant 0 : index
    %62 = vector.load %arg1[%c0_30, %c0_31] : memref<16x128xf32, #tpu.memory_space<vmem>>, vector<16x128xf32>
    %63 = arith.addf %61, %62 : vector<16x128xf32>
    %c0_32 = arith.constant 0 : index
    %c0_33 = arith.constant 0 : index
    %64 = vector.load %arg6[%c0_32, %c0_33] : memref<16x128xf32, #tpu.memory_space<vmem>>, vector<16x128xf32>
    tpu.vector_store %arg6[%c0_32, %c0_33], %63 {strides = array<i32>} : memref<16x128xf32, #tpu.memory_space<vmem>>, vector<16x128xf32>,
    return
  }
  func.func @transform_0(%arg0: i32) -> (i32, i32) {
    %c0_i32 = arith.constant 0 : i32
    %c0_i32_0 = arith.constant 0 : i32
    return %arg0, %c0_i32 : i32, i32
  }
  func.func @transform_1(%arg0: i32) -> (i32, i32) {
    %c0_i32 = arith.constant 0 : i32
    %c0_i32_0 = arith.constant 0 : i32
    %c0_i32_1 = arith.constant 0 : i32
    return %c0_i32, %c0_i32_0 : i32, i32
  }
  func.func @transform_2(%arg0: i32) -> (i32, i32) {
    %c0_i32 = arith.constant 0 : i32
    %c0_i32_0 = arith.constant 0 : i32
    %c0_i32_1 = arith.constant 0 : i32
    return %c0_i32, %c0_i32_0 : i32, i32
  }
  func.func @transform_3(%arg0: i32) -> (i32, i32) {
    %c0_i32 = arith.constant 0 : i32
    %c0_i32_0 = arith.constant 0 : i32
    %c0_i32_1 = arith.constant 0 : i32
    return %c0_i32, %c0_i32_0 : i32, i32
  }
  func.func @transform_4(%arg0: i32) -> (i32, i32) {
    %c0_i32 = arith.constant 0 : i32
    %c0_i32_0 = arith.constant 0 : i32
    %c0_i32_1 = arith.constant 0 : i32
    return %c0_i32, %c0_i32_0 : i32, i32
  }
  func.func @transform_5(%arg0: i32) -> (i32, i32) {
    %c0_i32 = arith.constant 0 : i32
    %c0_i32_0 = arith.constant 0 : i32
    return %arg0, %c0_i32 : i32, i32
  }
}

</mosaic_0001>

<llo_original>
// kernel: tpu_custom_call.1
$region0: #{tpu_custom_call.1}
  #allocation0 [shape = 'u32[]', space=smem, size = 0x4, offset = 0x4, fixed_abs, tag = 'smem constant byte address 0x4 - core index']
  #allocation1 [shape = 'u32[72,128]{1,0:T(1,128)}', space=vmem, size = 0x9000, scoped, tag = 'internal scratch']
  #allocation2 [shape = 'bf16[16,128]{1,0:T(8,128)(2,1)}', space=vmem, size = 0x1000, scoped, tag = 'scratch operand']
  #allocation3 [shape = 'f32[16,128]{1,0:T(8,128)}', space=vmem, size = 0x2000, scoped, tag = 'scratch operand']
  %s0 = inlined_call_operand.hbm [shape: f32[16,128], index: 0, kind: input, shape index: {}]
  %s1 = inlined_call_operand.hbm [shape: bf16[128,128], index: 1, kind: input, shape index: {}]
  %s2 = inlined_call_operand.vmem [shape: f32[1,128], index: 2, kind: input, shape index: {}]
  %s3 = inlined_call_operand.hbm [shape: bf16[128,128], index: 3, kind: input, shape index: {}]
  %s4 = inlined_call_operand.vmem [shape: f32[1,128], index: 4, kind: input, shape index: {}]
  %s5 = inlined_call_operand.hbm [shape: f32[16,128], index: 5, kind: output, shape index: {}]
  %s6 = sld [smem:[#allocation0]]
  $region42: #{tpu_custom_call.1} parent=0
    _
  %s8 = ssub.s32 1, %s6
  %s9 = scalar_select 0, %s8, %s6
  $region1: #{tpu_custom_call.1} parent=0
    #allocation4 [shape = 'u8[8192]{0}', space=vmem, size = 0x2000, scoped, tag = 'input window, operand 0, single buffered']
    #allocation5 [shape = 's32[1]{0}', space=sflag, size = 0x4, scoped, tag = 'scoped memory for tpu_custom_call.1']
    #allocation6 [shape = 's32[1]{0}', space=sflag, size = 0x4, scoped, tag = 'scoped memory for tpu_custom_call.1']
    #allocation7 [shape = 'u8[32768]{0}', space=vmem, size = 0x8000, scoped, tag = 'input window, operand 1, single buffered']
    #allocation8 [shape = 's32[1]{0}', space=sflag, size = 0x4, scoped, tag = 'scoped memory for tpu_custom_call.1']
    #allocation9 [shape = 'u8[32768]{0}', space=vmem, size = 0x8000, scoped, tag = 'input window, operand 3, single buffered']
    #allocation10 [shape = 'u8[8192]{0}', space=vmem, size = 0x2000, scoped, tag = 'output window, operand 0, single buffered']
    %10 = vsyncpa [#allocation5], 0
    %11 = vsyncpa [#allocation8], 0
    %12 = vsyncpa [#allocation6], 0
    // Predicated region
    $region2: #{tpu_custom_call.1} parent=1 // pred_check
      _
    $region3: #{tpu_custom_call.1} parent=1 // pred_check_branch
      %14 = sbr.rel (0) target = $region5
    $region4: #{tpu_custom_call.1} parent=1 // pred_region
      %16 = vsyncadd [#allocation5], 0
      %s17 = sshll.u32 %s0, 4
      %s18 = int_to_ptr.hbm [resolvable:$true] %s17
      %s19 = sshll.u32 [#allocation4], 4
      %s20 = int_to_ptr.vmem [resolvable:$true] %s19
      %25 = dma.hbm_to_vmem [thread:$0]  %s18, 256, %s20, [#allocation5], 128, 128, 8
    $region5: #{tpu_custom_call.1} parent=1 // pred_fallthru
      _
    // Predicated region
    $region6: #{tpu_custom_call.1} parent=1 // pred_check
      _
    $region7: #{tpu_custom_call.1} parent=1 // pred_check_branch
      %27 = sbr.rel (0) target = $region9
    $region8: #{tpu_custom_call.1} parent=1 // pred_region
      %29 = vsyncadd [#allocation8], 0
      %s30 = sshll.u32 %s1, 4
      %s31 = int_to_ptr.hbm [resolvable:$true] %s30
      %s32 = sshll.u32 [#allocation7], 4
      %s33 = int_to_ptr.vmem [resolvable:$true] %s32
      %38 = dma.hbm_to_vmem [thread:$0]  %s31, 1024, %s33, [#allocation8], 64, 64, 4
    $region9: #{tpu_custom_call.1} parent=1 // pred_fallthru
      _
    // Predicated region
    $region10: #{tpu_custom_call.1} parent=1 // pred_check
      _
    $region11: #{tpu_custom_call.1} parent=1 // pred_check_branch
      %40 = sbr.rel (0) target = $region13
    $region12: #{tpu_custom_call.1} parent=1 // pred_region
      _
    $region13: #{tpu_custom_call.1} parent=1 // pred_fallthru
      _
    // Predicated region
    $region14: #{tpu_custom_call.1} parent=1 // pred_check
      _
    $region15: #{tpu_custom_call.1} parent=1 // pred_check_branch
      %42 = sbr.rel (0) target = $region17
    $region16: #{tpu_custom_call.1} parent=1 // pred_region
      %44 = vsyncadd [#allocation8], 0
      %s45 = sshll.u32 %s3, 4
      %s46 = int_to_ptr.hbm [resolvable:$true] %s45
      %s47 = sshll.u32 [#allocation9], 4
      %s48 = int_to_ptr.vmem [resolvable:$true] %s47
      %53 = dma.hbm_to_vmem [thread:$0]  %s46, 1024, %s48, [#allocation8], 64, 64, 4
    $region17: #{tpu_custom_call.1} parent=1 // pred_fallthru
      _
    // Predicated region
    $region18: #{tpu_custom_call.1} parent=1 // pred_check
      _
    $region19: #{tpu_custom_call.1} parent=1 // pred_check_branch
      %55 = sbr.rel (0) target = $region21
    $region20: #{tpu_custom_call.1} parent=1 // pred_region
      _
    $region21: #{tpu_custom_call.1} parent=1 // pred_fallthru
      _
    // Predicated region
    $region22: #{tpu_custom_call.1} parent=1 // pred_check
      _
    $region23: #{tpu_custom_call.1} parent=1 // pred_check_branch
      %57 = sbr.rel (0) target = $region25
    $region24: #{tpu_custom_call.1} parent=1 // pred_region
      %59 = dma.done [#allocation5], 256
    $region25: #{tpu_custom_call.1} parent=1 // pred_fallthru
      _
    // Predicated region
    $region26: #{tpu_custom_call.1} parent=1 // pred_check
      _
    $region27: #{tpu_custom_call.1} parent=1 // pred_check_branch
      %61 = sbr.rel (0) target = $region29
    $region28: #{tpu_custom_call.1} parent=1 // pred_region
      %63 = dma.done [#allocation8], 1024
    $region29: #{tpu_custom_call.1} parent=1 // pred_fallthru
      _
    // Predicated region
    $region30: #{tpu_custom_call.1} parent=1 // pred_check
      _
    $region31: #{tpu_custom_call.1} parent=1 // pred_check_branch
      %65 = sbr.rel (0) target = $region33
    $region32: #{tpu_custom_call.1} parent=1 // pred_region
      %67 = dma.done [#allocation8], 1024
    $region33: #{tpu_custom_call.1} parent=1 // pred_fallthru
      _
    %v68 = vld [vmem:[#allocation4] sm:$0xff]
    %v69 = vld [vmem:[#allocation4 + $0x8] sm:$0xff]
    %70 = vadd.xlane.f32.xlu0 %v68
    %v71 = vpop.xlane.xlu0 %70
    %72 = vadd.xlane.f32.xlu0 %v69
    %v73 = vpop.xlane.xlu0 %72
    %v74 = vmul.f32 %v71, 0.03125
    %v75 = vmul.f32 %v73, 0.03125
    %v76 = vsub.f32 %v68, %v74
    %v77 = vsub.f32 %v69, %v75
    %v78 = vlaneseq
    %v79 = vand.u32 %v78, 127
    %vm80 = vcmp.lt.s32.totalorder %v79, 32
    %v81 = vsel %vm80, 1, 0
    %vm82 = vcmp.eq.s32.totalorder %v81, 1
    %v83 = vsel %vm82, %v76, 0.0
    %v84 = vsel %vm82, %v77, 0.0
    %v85 = vmul.f32 %v83, %v83
    %v86 = vmul.f32 %v84, %v84
    %87 = vadd.xlane.f32.xlu0 %v85
    %v88 = vpop.xlane.xlu0 %87
    %89 = vadd.xlane.f32.xlu0 %v86
    %v90 = vpop.xlane.xlu0 %89
    %v91 = vmul.f32 %v88, 0.03125
    %v92 = vmul.f32 %v90, 0.03125
    %v93 = vadd.f32 %v91, 1e-05
    %v94 = vadd.f32 %v92, 1e-05
    %v95 = vrsqrt.pop %v93
    %v96 = vmul.f32 %v95, %v93
    %v97 = vmul.f32 %v96, %v95
    %v98 = vmul.f32 0.5, %v97
    %v99 = vsub.f32 1.5, %v98
    %v100 = vmul.f32 %v95, %v99
    %vm101 = vweird.f32 %v93
    %vm102 = vweird.f32 %v95
    %vm103 = vmor %vm101, %vm102
    %v104 = vsel %vm103, %v95, %v100
    %v105 = vrsqrt.pop %v94
    %v106 = vmul.f32 %v105, %v94
    %v107 = vmul.f32 %v106, %v105
    %v108 = vmul.f32 0.5, %v107
    %v109 = vsub.f32 1.5, %v108
    %v110 = vmul.f32 %v105, %v109
    %vm111 = vweird.f32 %v94
    %vm112 = vweird.f32 %v105
    %vm113 = vmor %vm111, %vm112
    %v114 = vsel %vm113, %v105, %v110
    %v115 = vmul.f32 %v83, %v104
    %v116 = vmul.f32 %v84, %v114
    %v117 = vpack.c.bf16 %v115, %v115
    %v118 = vpack.c.bf16 %v116, %v116
    %119 = vst [vmem:[#allocation2] sm:$0xf] %v117
    %120 = vst [vmem:[#allocation2 + $0x4] sm:$0xf] %v118
    %121 = vst [vmem:[#allocation3] sm:$0xff] 0.0
    %122 = vst [vmem:[#allocation3 + $0x8] sm:$0xff] 0.0
    %v123 = vld [vmem:[#allocation2] sm:$0xf]
    %v124 = vld [vmem:[#allocation2 + $0x4] sm:$0xf]
    %v125 = vld [vmem:[#allocation7] sm:$0xf]
    %v126 = vld [vmem:[#allocation7 + $0x4] sm:$0xf]
    %v127 = vld [vmem:[#allocation7 + $0x8] sm:$0xf]
    %v128 = vld [vmem:[#allocation7 + $0xc] sm:$0xf]
    %v129 = vld [vmem:[#allocation7 + $0x10] sm:$0xf]
    %v130 = vld [vmem:[#allocation7 + $0x14] sm:$0xf]
    %v131 = vld [vmem:[#allocation7 + $0x18] sm:$0xf]
    %v132 = vld [vmem:[#allocation7 + $0x1c] sm:$0xf]
    %v133 = vld [vmem:[#allocation7 + $0x20] sm:$0xf]
    %v134 = vld [vmem:[#allocation7 + $0x24] sm:$0xf]
    %v135 = vld [vmem:[#allocation7 + $0x28] sm:$0xf]
    %v136 = vld [vmem:[#allocation7 + $0x2c] sm:$0xf]
    %v137 = vld [vmem:[#allocation7 + $0x30] sm:$0xf]
    %v138 = vld [vmem:[#allocation7 + $0x34] sm:$0xf]
    %v139 = vld [vmem:[#allocation7 + $0x38] sm:$0xf]
    %v140 = vld [vmem:[#allocation7 + $0x3c] sm:$0xf]
    %v141 = vld [vmem:[%s2] sm:$0x1]
    %v143 = vperm.slane %v141, 0
    %v147 = vunpack.c.l.b16 %v123
    %v148 = vunpack.c.l.b16 %v124
    %v149 = vpack.c.b16 %v148, %v147
    %v167 = vunpack.c.l.b16 %v125
    %v168 = vunpack.c.l.b16 %v126
    %v169 = vunpack.c.l.b16 %v127
    %v170 = vunpack.c.l.b16 %v128
    %v171 = vunpack.c.l.b16 %v129
    %v172 = vunpack.c.l.b16 %v130
    %v173 = vunpack.c.l.b16 %v131
    %v174 = vunpack.c.l.b16 %v132
    %v175 = vunpack.c.l.b16 %v133
    %v176 = vunpack.c.l.b16 %v134
    %v177 = vunpack.c.l.b16 %v135
    %v178 = vunpack.c.l.b16 %v136
    %v179 = vunpack.c.l.b16 %v137
    %v180 = vunpack.c.l.b16 %v138
    %v181 = vunpack.c.l.b16 %v139
    %v182 = vunpack.c.l.b16 %v140
    %v183 = vpack.c.b16 %v168, %v167
    %v184 = vpack.c.b16 %v170, %v169
    %v185 = vpack.c.b16 %v172, %v171
    %v186 = vpack.c.b16 %v174, %v173
    %v187 = vpack.c.b16 %v176, %v175
    %v188 = vpack.c.b16 %v178, %v177
    %v189 = vpack.c.b16 %v180, %v179
    %v190 = vpack.c.b16 %v182, %v181
    %199 = vmatpush.bf16.msra.mxu0 %v190
    %200 = vmatpush.bf16.msra.mxu0 %v189
    %201 = vmatpush.bf16.msra.mxu0 %v188
    %202 = vmatpush.bf16.msra.mxu0 %v187
    %203 = vmatpush.bf16.msra.mxu0 %v186
    %204 = vmatpush.bf16.msra.mxu0 %v185
    %205 = vmatpush.bf16.msra.mxu0 %v184
    %206 = vmatpush.bf16.msra.mxu0 %v183
    %207 = vmatmul.bf16.gmra.mxu0 %v149
    %v208 = vpop.f32.mrf.mxu0
    %v209 = vadd.f32 %v143, %v208
    %v210 = vpop.f32.mrf.mxu0
    %v211 = vadd.f32 %v143, %v210
    %212 = vdwg.mxu0
    %v213 = vpack.c.bf16 %v209, %v209
    %v214 = vpack.c.bf16 %v211, %v211
    %v215 = vunpack.c.l.bf16 %v213
    %v216 = vunpack.c.l.bf16 %v214
    %v217 = vmul.f32 %v215, 0.5
    %v218 = vmul.f32 %v216, 0.5
    %v219 = vpack.c.bf16 %v217, %v217
    %v220 = vpack.c.bf16 %v218, %v218
    %v221 = vmul.f32 %v215, 0.044677734
    %v222 = vmul.f32 %v216, 0.044677734
    %v223 = vpack.c.bf16 %v221, %v221
    %v224 = vpack.c.bf16 %v222, %v222
    %v225 = vunpack.c.l.bf16 %v223
    %v226 = vunpack.c.l.bf16 %v224
    %v227 = vmul.f32 %v225, %v215
    %v228 = vmul.f32 %v226, %v216
    %v229 = vpack.c.bf16 %v227, %v227
    %v230 = vpack.c.bf16 %v228, %v228
    %v231 = vunpack.c.l.bf16 %v229
    %v232 = vunpack.c.l.bf16 %v230
    %v233 = vmul.f32 %v231, %v215
    %v234 = vmul.f32 %v232, %v216
    %v235 = vpack.c.bf16 %v233, %v233
    %v236 = vpack.c.bf16 %v234, %v234
    %v237 = vunpack.c.l.bf16 %v235
    %v238 = vunpack.c.l.bf16 %v236
    %v239 = vadd.f32 %v215, %v237
    %v240 = vadd.f32 %v216, %v238
    %v241 = vpack.c.bf16 %v239, %v239
    %v242 = vpack.c.bf16 %v240, %v240
    %v243 = vunpack.c.l.bf16 %v241
    %v244 = vunpack.c.l.bf16 %v242
    %v245 = vmul.f32 %v243, 0.796875
    %v246 = vmul.f32 %v244, 0.796875
    %v247 = vpack.c.bf16 %v245, %v245
    %v248 = vpack.c.bf16 %v246, %v246
    %v249 = vunpack.c.l.bf16 %v247
    %v250 = vunpack.c.l.bf16 %v248
    %v251 = vtanh.pop %v249
    %v252 = vtanh.pop %v250
    %v253 = vpack.c.bf16 %v251, %v251
    %v254 = vpack.c.bf16 %v252, %v252
    %v255 = vunpack.c.l.bf16 %v253
    %v256 = vunpack.c.l.bf16 %v254
    %v257 = vadd.f32 %v255, 1.0
    %v258 = vadd.f32 %v256, 1.0
    %v259 = vpack.c.bf16 %v257, %v257
    %v260 = vpack.c.bf16 %v258, %v258
    %v261 = vunpack.c.l.bf16 %v219
    %v262 = vunpack.c.l.bf16 %v220
    %v263 = vunpack.c.l.bf16 %v259
    %v264 = vunpack.c.l.bf16 %v260
    %v265 = vmul.f32 %v261, %v263
    %v266 = vmul.f32 %v262, %v264
    %v267 = vpack.c.bf16 %v266, %v265
    %v268 = vld [vmem:[#allocation3] sm:$0xff]
    %v269 = vld [vmem:[#allocation3 + $0x8] sm:$0xff]
    %v270 = vld [vmem:[#allocation9] sm:$0xf]
    %v271 = vld [vmem:[#allocation9 + $0x4] sm:$0xf]
    %v272 = vld [vmem:[#allocation9 + $0x8] sm:$0xf]
    %v273 = vld [vmem:[#allocation9 + $0xc] sm:$0xf]
    %v274 = vld [vmem:[#allocation9 + $0x10] sm:$0xf]
    %v275 = vld [vmem:[#allocation9 + $0x14] sm:$0xf]
    %v276 = vld [vmem:[#allocation9 + $0x18] sm:$0xf]
    %v277 = vld [vmem:[#allocation9 + $0x1c] sm:$0xf]
    %v278 = vld [vmem:[#allocation9 + $0x20] sm:$0xf]
    %v279 = vld [vmem:[#allocation9 + $0x24] sm:$0xf]
    %v280 = vld [vmem:[#allocation9 + $0x28] sm:$0xf]
    %v281 = vld [vmem:[#allocation9 + $0x2c] sm:$0xf]
    %v282 = vld [vmem:[#allocation9 + $0x30] sm:$0xf]
    %v283 = vld [vmem:[#allocation9 + $0x34] sm:$0xf]
    %v284 = vld [vmem:[#allocation9 + $0x38] sm:$0xf]
    %v285 = vld [vmem:[#allocation9 + $0x3c] sm:$0xf]
    %v302 = vunpack.c.l.b16 %v270
    %v303 = vunpack.c.l.b16 %v271
    %v304 = vunpack.c.l.b16 %v272
    %v305 = vunpack.c.l.b16 %v273
    %v306 = vunpack.c.l.b16 %v274
    %v307 = vunpack.c.l.b16 %v275
    %v308 = vunpack.c.l.b16 %v276
    %v309 = vunpack.c.l.b16 %v277
    %v310 = vunpack.c.l.b16 %v278
    %v311 = vunpack.c.l.b16 %v279
    %v312 = vunpack.c.l.b16 %v280
    %v313 = vunpack.c.l.b16 %v281
    %v314 = vunpack.c.l.b16 %v282
    %v315 = vunpack.c.l.b16 %v283
    %v316 = vunpack.c.l.b16 %v284
    %v317 = vunpack.c.l.b16 %v285
    %v318 = vpack.c.b16 %v303, %v302
    %v319 = vpack.c.b16 %v305, %v304
    %v320 = vpack.c.b16 %v307, %v306
    %v321 = vpack.c.b16 %v309, %v308
    %v322 = vpack.c.b16 %v311, %v310
    %v323 = vpack.c.b16 %v313, %v312
    %v324 = vpack.c.b16 %v315, %v314
    %v325 = vpack.c.b16 %v317, %v316
    %334 = vmatpush.bf16.msra.mxu0 %v325
    %335 = vmatpush.bf16.msra.mxu0 %v324
    %336 = vmatpush.bf16.msra.mxu0 %v323
    %337 = vmatpush.bf16.msra.mxu0 %v322
    %338 = vmatpush.bf16.msra.mxu0 %v321
    %339 = vmatpush.bf16.msra.mxu0 %v320
    %340 = vmatpush.bf16.msra.mxu0 %v319
    %341 = vmatpush.bf16.msra.mxu0 %v318
    %342 = vmatmul.bf16.gmra.mxu0 %v267
    %v343 = vpop.f32.mrf.mxu0
    %v344 = vadd.f32 0.0, %v343
    %v345 = vpop.f32.mrf.mxu0
    %v346 = vadd.f32 0.0, %v345
    %347 = vdwg.mxu0
    %v348 = vadd.f32 %v268, %v344
    %v349 = vadd.f32 %v269, %v346
    %350 = vst [vmem:[#allocation3] sm:$0xff] %v348
    %351 = vst [vmem:[#allocation3 + $0x8] sm:$0xff] %v349
    %v352 = vld [vmem:[#allocation3] sm:$0xff]
    %v353 = vld [vmem:[#allocation3 + $0x8] sm:$0xff]
    %v354 = vld [vmem:[%s4] sm:$0x1]
    %v356 = vperm.slane %v354, 0
    %v358 = vadd.f32 %v352, %v356
    %v359 = vadd.f32 %v353, %v356
    %v360 = vld [vmem:[#allocation4] sm:$0xff]
    %v361 = vld [vmem:[#allocation4 + $0x8] sm:$0xff]
    %v362 = vadd.f32 %v358, %v360
    %v363 = vadd.f32 %v359, %v361
    %364 = vst [vmem:[#allocation10] sm:$0xff] %v362
    %365 = vst [vmem:[#allocation10 + $0x8] sm:$0xff] %v363
    // Predicated region
    $region34: #{tpu_custom_call.1} parent=1 // pred_check
      _
    $region35: #{tpu_custom_call.1} parent=1 // pred_check_branch
      %367 = sbr.rel (0) target = $region37
    $region36: #{tpu_custom_call.1} parent=1 // pred_region
      %369 = vsyncadd [#allocation6], 0
      %s370 = sshll.u32 [#allocation10], 4
      %s371 = int_to_ptr.vmem [resolvable:$true] %s370
      %s372 = sshll.u32 %s5, 4
      %s373 = int_to_ptr.hbm [resolvable:$true] %s372
      %378 = dma.vmem_to_hbm [thread:$0]  %s371, 256, %s373, [#allocation6], 128, 128, 8
    $region37: #{tpu_custom_call.1} parent=1 // pred_fallthru
      _
    // Predicated region
    $region38: #{tpu_custom_call.1} parent=1 // pred_check
      _
    $region39: #{tpu_custom_call.1} parent=1 // pred_check_branch
      %380 = sbr.rel (0) target = $region41
    $region40: #{tpu_custom_call.1} parent=1 // pred_region
      %382 = dma.done [#allocation6], 256
    $region41: #{tpu_custom_call.1} parent=1 // pred_fallthru
      _
    %383 = vsyncpa [#allocation5], 1
    %384 = vsyncpa [#allocation8], 1
    %385 = vsyncpa [#allocation6], 1

</llo_original>
